<compile_context>
chip_gen: v6e
topology: v6e:2x2x1
jax: 0.10.0
libtpu: 0.0.40
codegen_flags: <defaults>
</compile_context>

<pallas_src>
import functools

import jax
import jax.numpy as jnp
from jax.experimental import pallas as pl
from jax.experimental.pallas import tpu as pltpu

UNK = 1


def ffnn_kernel(ids_ref, table_ref, w1_ref, b1_ref, w2_ref, b2_ref, out_ref,
                *, num_classes):
    # ids_ref:   (B, L)   int32   SMEM
    # table_ref: (V, D)   f32     VMEM
    # w1_ref:    (D, HP)  f32     (zero-padded columns H..HP)
    # b1_ref:    (1, HP)  f32
    # w2_ref:    (HP, CP) f32     (zero-padded rows/cols)
    # b2_ref:    (1, CP)  f32
    # out_ref:   (B, CP)  f32     lane-dense padded log-probs
    B, L = ids_ref.shape
    V, _ = table_ref.shape
    CP = out_ref.shape[1]

    # ---- embedding lookup + mean(dim=1), fused as (one-hot counts) @ table on MXU.
    # Token ids are read as scalars from SMEM (B*L is tiny, static unroll); each id
    # becomes a one-hot lane vector via a scalar-vs-iota compare, accumulated into a
    # per-batch count row.  counts @ table == mean of the gathered embeddings.
    lane_v = jax.lax.broadcasted_iota(jnp.int32, (1, V), 1)
    inv_len = jnp.float32(1.0 / L)
    rows = []
    for b in range(B):                              # static unroll (B is tiny)
        acc = jnp.zeros((1, V), jnp.float32)
        for l in range(L):                          # static unroll (scalar SMEM reads)
            tok = ids_ref[b, l]
            tok = jnp.where(tok == -1, UNK, tok)    # torch: x[x == -1] = UNK
            acc = acc + (lane_v == tok).astype(jnp.float32)
        rows.append(acc * inv_len)
    counts = jnp.concatenate(rows, axis=0)          # (B, V)

    x = jnp.dot(counts, table_ref[...],
                preferred_element_type=jnp.float32)                 # (B, D)

    # ---- hidden layer + ReLU (padded hidden lanes stay exactly 0)
    h = jnp.dot(x, w1_ref[...], preferred_element_type=jnp.float32) + b1_ref[...]
    h = jnp.maximum(h, 0.0)                                          # (B, HP)

    # TODO(synk): dropout(p=0.175) is identity in eval mode; omitted.

    # ---- output layer
    logits = jnp.dot(h, w2_ref[...], preferred_element_type=jnp.float32) + b2_ref[...]

    # mask padded class lanes so they cannot corrupt the log-softmax normalizer
    lane_c = jax.lax.broadcasted_iota(jnp.int32, (B, CP), 1)
    logits = jnp.where(lane_c < num_classes, logits, jnp.float32(-1e30))

    # numerically stable log_softmax over dim=1
    m = jnp.max(logits, axis=1, keepdims=True)
    shifted = logits - m
    lse = jnp.log(jnp.sum(jnp.exp(shifted), axis=1, keepdims=True))
    out_ref[...] = shifted - lse


def pad_ffnn_params(w1, b1, w2, b2, hidden_pad=256, class_pad=128):
    """Zero-pad weights once at setup so the kernel sees lane/MXU-aligned shapes."""
    D, H = w1.shape
    C = w2.shape[1]
    HP = max(hidden_pad, ((H + 127) // 128) * 128)
    CP = max(class_pad, ((C + 127) // 128) * 128)
    w1p = jnp.pad(w1, ((0, 0), (0, HP - H)))
    b1p = jnp.pad(b1, ((0, 0), (0, HP - H)))
    w2p = jnp.pad(w2, ((0, HP - H), (0, CP - C)))
    b2p = jnp.pad(b2, ((0, 0), (0, CP - C)))
    return w1p, b1p, w2p, b2p, C


def ffnn_forward(token_ids, embedding_table, w1p, b1p, w2p, b2p, num_classes):
    """token_ids: (B, L) or (L,) int32; padded params from pad_ffnn_params.
    Returns (B, num_classes) log-probabilities."""
    if token_ids.ndim == 1:
        token_ids = token_ids[None, :]
    token_ids = token_ids.astype(jnp.int32)

    B, L = token_ids.shape
    V, D = embedding_table.shape
    HP = w1p.shape[1]
    CP = w2p.shape[1]

    cost = pl.CostEstimate(
        flops=2 * B * (V * D + D * HP + HP * CP) + B * L * V,
        transcendentals=B * CP + B,
        bytes_accessed=4 * (B * L + V * D + D * HP + HP + HP * CP + CP + B * CP),
    )

    out_padded = pl.pallas_call(
        functools.partial(ffnn_kernel, num_classes=num_classes),
        out_shape=jax.ShapeDtypeStruct((B, CP), jnp.float32),
        in_specs=[
            pl.BlockSpec(memory_space=pltpu.MemorySpace.SMEM),   # token ids (scalars)
            pl.BlockSpec(memory_space=pltpu.MemorySpace.VMEM),   # embedding table
            pl.BlockSpec(memory_space=pltpu.MemorySpace.VMEM),   # w1 (D, HP)
            pl.BlockSpec(memory_space=pltpu.MemorySpace.VMEM),   # b1 (1, HP)
            pl.BlockSpec(memory_space=pltpu.MemorySpace.VMEM),   # w2 (HP, CP)
            pl.BlockSpec(memory_space=pltpu.MemorySpace.VMEM),   # b2 (1, CP)
        ],
        out_specs=pl.BlockSpec(memory_space=pltpu.MemorySpace.VMEM),
        cost_estimate=cost,
    )(token_ids, embedding_table, w1p, b1p, w2p, b2p)

    return out_padded[:, :num_classes]


def xavier_uniform(key, fan_in, fan_out):
    bound = jnp.sqrt(6.0 / (fan_in + fan_out))
    # stored as (fan_in, fan_out) so the kernel computes x @ W directly
    return jax.random.uniform(key, (fan_in, fan_out), jnp.float32, -bound, bound)


def linear_bias(key, fan_in, fan_out):
    # PyTorch nn.Linear default bias init: U(-1/sqrt(fan_in), 1/sqrt(fan_in))
    bound = 1.0 / jnp.sqrt(jnp.float32(fan_in))
    return jax.random.uniform(key, (1, fan_out), jnp.float32, -bound, bound)


if __name__ == "__main__":
    # small, deterministic synthetic setup
    vocab_size = 50
    embedding_dimension = 32
    hidden_layer_size = 225
    num_classes = 5
    batch = 2
    seq_len = 8

    root = jax.random.PRNGKey(0)
    k_emb, k_w1, k_b1, k_w2, k_b2, k_x = jax.random.split(root, 6)

    embedding_table = jax.random.normal(
        k_emb, (vocab_size, embedding_dimension), jnp.float32) * 0.1
    w1 = xavier_uniform(k_w1, embedding_dimension, hidden_layer_size)
    b1 = linear_bias(k_b1, embedding_dimension, hidden_layer_size)
    w2 = xavier_uniform(k_w2, hidden_layer_size, num_classes)
    b2 = linear_bias(k_b2, hidden_layer_size, num_classes)

    # token ids in [-1, vocab_size); -1 entries exercise the UNK replacement
    token_ids = jax.random.randint(k_x, (batch, seq_len), -1, vocab_size, jnp.int32)

    # pad weights once at init (not per forward call)
    w1p, b1p, w2p, b2p, C = pad_ffnn_params(w1, b1, w2, b2)

    log_probs = ffnn_forward(token_ids, embedding_table, w1p, b1p, w2p, b2p, C)
    jax.block_until_ready(log_probs)

    # pure-JAX reference of the original forward pass
    ids_ref = jnp.where(token_ids == -1, UNK, token_ids)
    emb_ref = jnp.take(embedding_table, ids_ref, axis=0)      # (B, L, D)
    x_ref = jnp.mean(emb_ref, axis=1)
    h_ref = jnp.maximum(x_ref @ w1 + b1, 0.0)
    ref = jax.nn.log_softmax(h_ref @ w2 + b2, axis=1)

    assert log_probs.shape == (batch, num_classes)
    assert bool(jnp.all(jnp.abs(log_probs - ref) < 1e-4))
    row_sums = jnp.sum(jnp.exp(log_probs), axis=1)
    assert bool(jnp.all(jnp.abs(row_sums - 1.0) < 1e-4))

    print("KERNEL_OK")
</pallas_src>

<mosaic_0001>
module attributes {stable_mosaic.version = 11 : i64} {
  func.func @ffnn_kernel(%arg0: memref<2x8xi32, #tpu.memory_space<smem>>, %arg1: memref<50x32xf32, #tpu.memory_space<vmem>>, %arg2: memref<32x256xf32, #tpu.memory_space<vmem>>, %arg3: memref<1x256xf32, #tpu.memory_space<vmem>>, %arg4: memref<256x128xf32, #tpu.memory_space<vmem>>, %arg5: memref<1x128xf32, #tpu.memory_space<vmem>>, %arg6: memref<2x128xf32, #tpu.memory_space<vmem>>) attributes {dimension_semantics = [], scalar_prefetch = 0 : i64, scratch_operands = 0 : i64, tpu.core_type = #tpu.core_type<tc>} {
    %0 = tpu.iota {dimensions = array<i32: 1>} : vector<1x50xi32>
    %cst = arith.constant 0.000000e+00 : f32
    %1 = vector.broadcast %cst : f32 to vector<1x50xf32>
    %c0 = arith.constant 0 : index
    %c0_0 = arith.constant 0 : index
    %2 = memref.load %arg0[%c0, %c0_0] : memref<2x8xi32, #tpu.memory_space<smem>>
    %c-1_i32 = arith.constant -1 : i32
    %3 = arith.cmpi eq, %2, %c-1_i32 : i32
    %c1_i32 = arith.constant 1 : i32
    %4 = arith.select %3, %c1_i32, %2 : i32
    %5 = vector.broadcast %4 : i32 to vector<1x50xi32>
    %6 = arith.cmpi eq, %0, %5 : vector<1x50xi32>
    %7 = arith.extui %6 : vector<1x50xi1> to vector<1x50xi32>
    %8 = arith.sitofp %7 : vector<1x50xi32> to vector<1x50xf32>
    %9 = arith.addf %1, %8 : vector<1x50xf32>
    %c0_1 = arith.constant 0 : index
    %c1 = arith.constant 1 : index
    %10 = memref.load %arg0[%c0_1, %c1] : memref<2x8xi32, #tpu.memory_space<smem>>
    %c-1_i32_2 = arith.constant -1 : i32
    %11 = arith.cmpi eq, %10, %c-1_i32_2 : i32
    %c1_i32_3 = arith.constant 1 : i32
    %12 = arith.select %11, %c1_i32_3, %10 : i32
    %13 = vector.broadcast %12 : i32 to vector<1x50xi32>
    %14 = arith.cmpi eq, %0, %13 : vector<1x50xi32>
    %15 = arith.extui %14 : vector<1x50xi1> to vector<1x50xi32>
    %16 = arith.sitofp %15 : vector<1x50xi32> to vector<1x50xf32>
    %17 = arith.addf %9, %16 : vector<1x50xf32>
    %c0_4 = arith.constant 0 : index
    %c2 = arith.constant 2 : index
    %18 = memref.load %arg0[%c0_4, %c2] : memref<2x8xi32, #tpu.memory_space<smem>>
    %c-1_i32_5 = arith.constant -1 : i32
    %19 = arith.cmpi eq, %18, %c-1_i32_5 : i32
    %c1_i32_6 = arith.constant 1 : i32
    %20 = arith.select %19, %c1_i32_6, %18 : i32
    %21 = vector.broadcast %20 : i32 to vector<1x50xi32>
    %22 = arith.cmpi eq, %0, %21 : vector<1x50xi32>
    %23 = arith.extui %22 : vector<1x50xi1> to vector<1x50xi32>
    %24 = arith.sitofp %23 : vector<1x50xi32> to vector<1x50xf32>
    %25 = arith.addf %17, %24 : vector<1x50xf32>
    %c0_7 = arith.constant 0 : index
    %c3 = arith.constant 3 : index
    %26 = memref.load %arg0[%c0_7, %c3] : memref<2x8xi32, #tpu.memory_space<smem>>
    %c-1_i32_8 = arith.constant -1 : i32
    %27 = arith.cmpi eq, %26, %c-1_i32_8 : i32
    %c1_i32_9 = arith.constant 1 : i32
    %28 = arith.select %27, %c1_i32_9, %26 : i32
    %29 = vector.broadcast %28 : i32 to vector<1x50xi32>
    %30 = arith.cmpi eq, %0, %29 : vector<1x50xi32>
    %31 = arith.extui %30 : vector<1x50xi1> to vector<1x50xi32>
    %32 = arith.sitofp %31 : vector<1x50xi32> to vector<1x50xf32>
    %33 = arith.addf %25, %32 : vector<1x50xf32>
    %c0_10 = arith.constant 0 : index
    %c4 = arith.constant 4 : index
    %34 = memref.load %arg0[%c0_10, %c4] : memref<2x8xi32, #tpu.memory_space<smem>>
    %c-1_i32_11 = arith.constant -1 : i32
    %35 = arith.cmpi eq, %34, %c-1_i32_11 : i32
    %c1_i32_12 = arith.constant 1 : i32
    %36 = arith.select %35, %c1_i32_12, %34 : i32
    %37 = vector.broadcast %36 : i32 to vector<1x50xi32>
    %38 = arith.cmpi eq, %0, %37 : vector<1x50xi32>
    %39 = arith.extui %38 : vector<1x50xi1> to vector<1x50xi32>
    %40 = arith.sitofp %39 : vector<1x50xi32> to vector<1x50xf32>
    %41 = arith.addf %33, %40 : vector<1x50xf32>
    %c0_13 = arith.constant 0 : index
    %c5 = arith.constant 5 : index
    %42 = memref.load %arg0[%c0_13, %c5] : memref<2x8xi32, #tpu.memory_space<smem>>
    %c-1_i32_14 = arith.constant -1 : i32
    %43 = arith.cmpi eq, %42, %c-1_i32_14 : i32
    %c1_i32_15 = arith.constant 1 : i32
    %44 = arith.select %43, %c1_i32_15, %42 : i32
    %45 = vector.broadcast %44 : i32 to vector<1x50xi32>
    %46 = arith.cmpi eq, %0, %45 : vector<1x50xi32>
    %47 = arith.extui %46 : vector<1x50xi1> to vector<1x50xi32>
    %48 = arith.sitofp %47 : vector<1x50xi32> to vector<1x50xf32>
    %49 = arith.addf %41, %48 : vector<1x50xf32>
    %c0_16 = arith.constant 0 : index
    %c6 = arith.constant 6 : index
    %50 = memref.load %arg0[%c0_16, %c6] : memref<2x8xi32, #tpu.memory_space<smem>>
    %c-1_i32_17 = arith.constant -1 : i32
    %51 = arith.cmpi eq, %50, %c-1_i32_17 : i32
    %c1_i32_18 = arith.constant 1 : i32
    %52 = arith.select %51, %c1_i32_18, %50 : i32
    %53 = vector.broadcast %52 : i32 to vector<1x50xi32>
    %54 = arith.cmpi eq, %0, %53 : vector<1x50xi32>
    %55 = arith.extui %54 : vector<1x50xi1> to vector<1x50xi32>
    %56 = arith.sitofp %55 : vector<1x50xi32> to vector<1x50xf32>
    %57 = arith.addf %49, %56 : vector<1x50xf32>
    %c0_19 = arith.constant 0 : index
    %c7 = arith.constant 7 : index
    %58 = memref.load %arg0[%c0_19, %c7] : memref<2x8xi32, #tpu.memory_space<smem>>
    %c-1_i32_20 = arith.constant -1 : i32
    %59 = arith.cmpi eq, %58, %c-1_i32_20 : i32
    %c1_i32_21 = arith.constant 1 : i32
    %60 = arith.select %59, %c1_i32_21, %58 : i32
    %61 = vector.broadcast %60 : i32 to vector<1x50xi32>
    %62 = arith.cmpi eq, %0, %61 : vector<1x50xi32>
    %63 = arith.extui %62 : vector<1x50xi1> to vector<1x50xi32>
    %64 = arith.sitofp %63 : vector<1x50xi32> to vector<1x50xf32>
    %65 = arith.addf %57, %64 : vector<1x50xf32>
    %cst_22 = arith.constant 1.250000e-01 : f32
    %66 = vector.broadcast %cst_22 : f32 to vector<1x50xf32>
    %67 = arith.mulf %65, %66 : vector<1x50xf32>
    %cst_23 = arith.constant 0.000000e+00 : f32
    %68 = vector.broadcast %cst_23 : f32 to vector<1x50xf32>
    %c1_24 = arith.constant 1 : index
    %c0_25 = arith.constant 0 : index
    %69 = memref.load %arg0[%c1_24, %c0_25] : memref<2x8xi32, #tpu.memory_space<smem>>
    %c-1_i32_26 = arith.constant -1 : i32
    %70 = arith.cmpi eq, %69, %c-1_i32_26 : i32
    %c1_i32_27 = arith.constant 1 : i32
    %71 = arith.select %70, %c1_i32_27, %69 : i32
    %72 = vector.broadcast %71 : i32 to vector<1x50xi32>
    %73 = arith.cmpi eq, %0, %72 : vector<1x50xi32>
    %74 = arith.extui %73 : vector<1x50xi1> to vector<1x50xi32>
    %75 = arith.sitofp %74 : vector<1x50xi32> to vector<1x50xf32>
    %76 = arith.addf %68, %75 : vector<1x50xf32>
    %c1_28 = arith.constant 1 : index
    %c1_29 = arith.constant 1 : index
    %77 = memref.load %arg0[%c1_28, %c1_29] : memref<2x8xi32, #tpu.memory_space<smem>>
    %c-1_i32_30 = arith.constant -1 : i32
    %78 = arith.cmpi eq, %77, %c-1_i32_30 : i32
    %c1_i32_31 = arith.constant 1 : i32
    %79 = arith.select %78, %c1_i32_31, %77 : i32
    %80 = vector.broadcast %79 : i32 to vector<1x50xi32>
    %81 = arith.cmpi eq, %0, %80 : vector<1x50xi32>
    %82 = arith.extui %81 : vector<1x50xi1> to vector<1x50xi32>
    %83 = arith.sitofp %82 : vector<1x50xi32> to vector<1x50xf32>
    %84 = arith.addf %76, %83 : vector<1x50xf32>
    %c1_32 = arith.constant 1 : index
    %c2_33 = arith.constant 2 : index
    %85 = memref.load %arg0[%c1_32, %c2_33] : memref<2x8xi32, #tpu.memory_space<smem>>
    %c-1_i32_34 = arith.constant -1 : i32
    %86 = arith.cmpi eq, %85, %c-1_i32_34 : i32
    %c1_i32_35 = arith.constant 1 : i32
    %87 = arith.select %86, %c1_i32_35, %85 : i32
    %88 = vector.broadcast %87 : i32 to vector<1x50xi32>
    %89 = arith.cmpi eq, %0, %88 : vector<1x50xi32>
    %90 = arith.extui %89 : vector<1x50xi1> to vector<1x50xi32>
    %91 = arith.sitofp %90 : vector<1x50xi32> to vector<1x50xf32>
    %92 = arith.addf %84, %91 : vector<1x50xf32>
    %c1_36 = arith.constant 1 : index
    %c3_37 = arith.constant 3 : index
    %93 = memref.load %arg0[%c1_36, %c3_37] : memref<2x8xi32, #tpu.memory_space<smem>>
    %c-1_i32_38 = arith.constant -1 : i32
    %94 = arith.cmpi eq, %93, %c-1_i32_38 : i32
    %c1_i32_39 = arith.constant 1 : i32
    %95 = arith.select %94, %c1_i32_39, %93 : i32
    %96 = vector.broadcast %95 : i32 to vector<1x50xi32>
    %97 = arith.cmpi eq, %0, %96 : vector<1x50xi32>
    %98 = arith.extui %97 : vector<1x50xi1> to vector<1x50xi32>
    %99 = arith.sitofp %98 : vector<1x50xi32> to vector<1x50xf32>
    %100 = arith.addf %92, %99 : vector<1x50xf32>
    %c1_40 = arith.constant 1 : index
    %c4_41 = arith.constant 4 : index
    %101 = memref.load %arg0[%c1_40, %c4_41] : memref<2x8xi32, #tpu.memory_space<smem>>
    %c-1_i32_42 = arith.constant -1 : i32
    %102 = arith.cmpi eq, %101, %c-1_i32_42 : i32
    %c1_i32_43 = arith.constant 1 : i32
    %103 = arith.select %102, %c1_i32_43, %101 : i32
    %104 = vector.broadcast %103 : i32 to vector<1x50xi32>
    %105 = arith.cmpi eq, %0, %104 : vector<1x50xi32>
    %106 = arith.extui %105 : vector<1x50xi1> to vector<1x50xi32>
    %107 = arith.sitofp %106 : vector<1x50xi32> to vector<1x50xf32>
    %108 = arith.addf %100, %107 : vector<1x50xf32>
    %c1_44 = arith.constant 1 : index
    %c5_45 = arith.constant 5 : index
    %109 = memref.load %arg0[%c1_44, %c5_45] : memref<2x8xi32, #tpu.memory_space<smem>>
    %c-1_i32_46 = arith.constant -1 : i32
    %110 = arith.cmpi eq, %109, %c-1_i32_46 : i32
    %c1_i32_47 = arith.constant 1 : i32
    %111 = arith.select %110, %c1_i32_47, %109 : i32
    %112 = vector.broadcast %111 : i32 to vector<1x50xi32>
    %113 = arith.cmpi eq, %0, %112 : vector<1x50xi32>
    %114 = arith.extui %113 : vector<1x50xi1> to vector<1x50xi32>
    %115 = arith.sitofp %114 : vector<1x50xi32> to vector<1x50xf32>
    %116 = arith.addf %108, %115 : vector<1x50xf32>
    %c1_48 = arith.constant 1 : index
    %c6_49 = arith.constant 6 : index
    %117 = memref.load %arg0[%c1_48, %c6_49] : memref<2x8xi32, #tpu.memory_space<smem>>
    %c-1_i32_50 = arith.constant -1 : i32
    %118 = arith.cmpi eq, %117, %c-1_i32_50 : i32
    %c1_i32_51 = arith.constant 1 : i32
    %119 = arith.select %118, %c1_i32_51, %117 : i32
    %120 = vector.broadcast %119 : i32 to vector<1x50xi32>
    %121 = arith.cmpi eq, %0, %120 : vector<1x50xi32>
    %122 = arith.extui %121 : vector<1x50xi1> to vector<1x50xi32>
    %123 = arith.sitofp %122 : vector<1x50xi32> to vector<1x50xf32>
    %124 = arith.addf %116, %123 : vector<1x50xf32>
    %c1_52 = arith.constant 1 : index
    %c7_53 = arith.constant 7 : index
    %125 = memref.load %arg0[%c1_52, %c7_53] : memref<2x8xi32, #tpu.memory_space<smem>>
    %c-1_i32_54 = arith.constant -1 : i32
    %126 = arith.cmpi eq, %125, %c-1_i32_54 : i32
    %c1_i32_55 = arith.constant 1 : i32
    %127 = arith.select %126, %c1_i32_55, %125 : i32
    %128 = vector.broadcast %127 : i32 to vector<1x50xi32>
    %129 = arith.cmpi eq, %0, %128 : vector<1x50xi32>
    %130 = arith.extui %129 : vector<1x50xi1> to vector<1x50xi32>
    %131 = arith.sitofp %130 : vector<1x50xi32> to vector<1x50xf32>
    %132 = arith.addf %124, %131 : vector<1x50xf32>
    %cst_56 = arith.constant 1.250000e-01 : f32
    %133 = vector.broadcast %cst_56 : f32 to vector<1x50xf32>
    %134 = arith.mulf %132, %133 : vector<1x50xf32>
    %135 = tpu.concatenate %67, %134 in 0 : vector<1x50xf32>, vector<1x50xf32> -> vector<2x50xf32>
    %c0_57 = arith.constant 0 : index
    %c0_58 = arith.constant 0 : index
    %136 = vector.load %arg1[%c0_57, %c0_58] : memref<50x32xf32, #tpu.memory_space<vmem>>, vector<50x32xf32>
    %cst_59 = arith.constant dense<0.000000e+00> : vector<2x32xf32>
    %137 = tpu.matmul %135, %136, %cst_59 {dimension_numbers = #tpu.dot_dimension_numbers<[1], [0], [0], [1], [0, 0, 1, 1], [], []>} : vector<2x50xf32>, vector<50x32xf32>, vector<2x32xf32> -> vector<2x32xf32>
    %c0_60 = arith.constant 0 : index
    %c0_61 = arith.constant 0 : index
    %138 = vector.load %arg2[%c0_60, %c0_61] : memref<32x256xf32, #tpu.memory_space<vmem>>, vector<32x256xf32>
    %cst_62 = arith.constant dense<0.000000e+00> : vector<2x256xf32>
    %139 = tpu.matmul %137, %138, %cst_62 {dimension_numbers = #tpu.dot_dimension_numbers<[1], [0], [0], [1], [0, 0, 1, 1], [], []>} : vector<2x32xf32>, vector<32x256xf32>, vector<2x256xf32> -> vector<2x256xf32>
    %c0_63 = arith.constant 0 : index
    %c0_64 = arith.constant 0 : index
    %140 = vector.load %arg3[%c0_63, %c0_64] : memref<1x256xf32, #tpu.memory_space<vmem>>, vector<1x256xf32>
    %141 = vector.broadcast %140 : vector<1x256xf32> to vector<2x256xf32>
    %142 = arith.addf %139, %141 : vector<2x256xf32>
    %cst_65 = arith.constant 0.000000e+00 : f32
    %143 = vector.broadcast %cst_65 : f32 to vector<2x256xf32>
    %144 = arith.maximumf %142, %143 : vector<2x256xf32>
    %c0_66 = arith.constant 0 : index
    %c0_67 = arith.constant 0 : index
    %145 = vector.load %arg4[%c0_66, %c0_67] : memref<256x128xf32, #tpu.memory_space<vmem>>, vector<256x128xf32>
    %cst_68 = arith.constant dense<0.000000e+00> : vector<2x128xf32>
    %146 = tpu.matmul %144, %145, %cst_68 {dimension_numbers = #tpu.dot_dimension_numbers<[1], [0], [0], [1], [0, 0, 1, 1], [], []>} : vector<2x256xf32>, vector<256x128xf32>, vector<2x128xf32> -> vector<2x128xf32>
    %c0_69 = arith.constant 0 : index
    %c0_70 = arith.constant 0 : index
    %147 = vector.load %arg5[%c0_69, %c0_70] : memref<1x128xf32, #tpu.memory_space<vmem>>, vector<1x128xf32>
    %148 = vector.broadcast %147 : vector<1x128xf32> to vector<2x128xf32>
    %149 = arith.addf %146, %148 : vector<2x128xf32>
    %150 = tpu.iota {dimensions = array<i32: 1>} : vector<2x128xi32>
    %c5_i32 = arith.constant 5 : i32
    %151 = vector.broadcast %c5_i32 : i32 to vector<2x128xi32>
    %152 = arith.cmpi slt, %150, %151 : vector<2x128xi32>
    %cst_71 = arith.constant -1.000000e+30 : f32
    %153 = vector.broadcast %cst_71 : f32 to vector<2x128xf32>
    %154 = arith.select %152, %149, %153 : vector<2x128xi1>, vector<2x128xf32>
    %cst_72 = arith.constant dense<0xFF800000> : vector<2xf32>
    %155 = vector.multi_reduction <maximumf>, %154, %cst_72 [1] : vector<2x128xf32> to vector<2xf32>
    %156 = vector.shape_cast %155 : vector<2xf32> to vector<2x1xf32>
    %157 = vector.broadcast %156 : vector<2x1xf32> to vector<2x128xf32>
    %158 = arith.subf %154, %157 : vector<2x128xf32>
    %159 = math.exp %158 : vector<2x128xf32>
    %cst_73 = arith.constant dense<0.000000e+00> : vector<2xf32>
    %160 = vector.multi_reduction <add>, %159, %cst_73 [1] : vector<2x128xf32> to vector<2xf32>
    %161 = vector.shape_cast %160 : vector<2xf32> to vector<2x1xf32>
    %162 = math.log %161 : vector<2x1xf32>
    %163 = vector.broadcast %162 : vector<2x1xf32> to vector<2x128xf32>
    %164 = arith.subf %158, %163 : vector<2x128xf32>
    %c0_74 = arith.constant 0 : index
    %c0_75 = arith.constant 0 : index
    %165 = vector.load %arg6[%c0_74, %c0_75] : memref<2x128xf32, #tpu.memory_space<vmem>>, vector<2x128xf32>
    tpu.vector_store %arg6[%c0_74, %c0_75], %164 {strides = array<i32>} : memref<2x128xf32, #tpu.memory_space<vmem>>, vector<2x128xf32>,
    return
  }
}

</mosaic_0001>

<llo_original>
// kernel: tpu_custom_call.1
$region0: #{tpu_custom_call.1}
  #allocation0 [shape = 'u32[]', space=smem, size = 0x4, offset = 0x4, fixed_abs, tag = 'smem constant byte address 0x4 - core index']
  #allocation1 [shape = 'u32[144,128]{1,0:T(1,128)}', space=vmem, size = 0x12000, scoped, tag = 'internal scratch']
  %s0 = inlined_call_operand.vmem [shape: s32[2,8], index: 0, kind: input, shape index: {}]
  %s1 = inlined_call_operand.vmem [shape: f32[50,32], index: 1, kind: input, shape index: {}]
  %s2 = inlined_call_operand.vmem [shape: f32[32,256], index: 2, kind: input, shape index: {}]
  %s3 = inlined_call_operand.vmem [shape: f32[1,256], index: 3, kind: input, shape index: {}]
  %s4 = inlined_call_operand.hbm [shape: f32[256,128], index: 4, kind: input, shape index: {}]
  %s5 = inlined_call_operand.vmem [shape: f32[1,128], index: 5, kind: input, shape index: {}]
  %s6 = inlined_call_operand.hbm [shape: f32[2,128], index: 6, kind: output, shape index: {}]
  %s7 = sld [smem:[#allocation0]]
  $region42: #{tpu_custom_call.1} parent=0
    _
  %s9 = ssub.s32 1, %s7
  %s10 = scalar_select 0, %s9, %s7
  $region1: #{tpu_custom_call.1} parent=0
    #allocation2 [shape = 'u8[1024]{0}', space=smem, size = 0x400, scoped, tag = 'input window, operand 0, single buffered']
    #allocation3 [shape = 's32[1]{0}', space=sflag, size = 0x4, scoped, tag = 'scoped memory for tpu_custom_call.1']
    #allocation4 [shape = 's32[1]{0}', space=sflag, size = 0x4, scoped, tag = 'scoped memory for tpu_custom_call.1']
    #allocation5 [shape = 's32[1]{0}', space=sflag, size = 0x4, scoped, tag = 'scoped memory for tpu_custom_call.1']
    #allocation6 [shape = 'u8[131072]{0}', space=vmem, size = 0x20000, scoped, tag = 'input window, operand 4, single buffered']
    #allocation7 [shape = 'u8[1024]{0}', space=vmem, size = 0x400, scoped, tag = 'output window, operand 0, single buffered']
    %11 = vsyncpa [#allocation5], 0
    %12 = vsyncpa [#allocation3], 0
    %13 = vsyncpa [#allocation4], 0
    // Predicated region
    $region2: #{tpu_custom_call.1} parent=1 // pred_check
      _
    $region3: #{tpu_custom_call.1} parent=1 // pred_check_branch
      %15 = sbr.rel (0) target = $region5
    $region4: #{tpu_custom_call.1} parent=1 // pred_region
      %s17 = ssub.s32 32, 32
      %18 = vsyncadd [#allocation5], %s17
      %s20 = sshll.u32 %s0, 4
      %s21 = int_to_ptr.vmem [resolvable:$true] %s20
      %23 = dma.vmem_to_smem %s21, 32, [#allocation2], [#allocation5]
    $region5: #{tpu_custom_call.1} parent=1 // pred_fallthru
      _
    // Predicated region
    $region6: #{tpu_custom_call.1} parent=1 // pred_check
      _
    $region7: #{tpu_custom_call.1} parent=1 // pred_check_branch
      %25 = sbr.rel (0) target = $region9
    $region8: #{tpu_custom_call.1} parent=1 // pred_region
      _
    $region9: #{tpu_custom_call.1} parent=1 // pred_fallthru
      _
    // Predicated region
    $region10: #{tpu_custom_call.1} parent=1 // pred_check
      _
    $region11: #{tpu_custom_call.1} parent=1 // pred_check_branch
      %27 = sbr.rel (0) target = $region13
    $region12: #{tpu_custom_call.1} parent=1 // pred_region
      _
    $region13: #{tpu_custom_call.1} parent=1 // pred_fallthru
      _
    // Predicated region
    $region14: #{tpu_custom_call.1} parent=1 // pred_check
      _
    $region15: #{tpu_custom_call.1} parent=1 // pred_check_branch
      %29 = sbr.rel (0) target = $region17
    $region16: #{tpu_custom_call.1} parent=1 // pred_region
      _
    $region17: #{tpu_custom_call.1} parent=1 // pred_fallthru
      _
    // Predicated region
    $region18: #{tpu_custom_call.1} parent=1 // pred_check
      _
    $region19: #{tpu_custom_call.1} parent=1 // pred_check_branch
      %31 = sbr.rel (0) target = $region21
    $region20: #{tpu_custom_call.1} parent=1 // pred_region
      %s33 = ssub.s32 4096, 4096
      %34 = vsyncadd [#allocation3], %s33
      %s35 = sshll.u32 [#allocation6], 4
      %s36 = int_to_ptr.vmem [resolvable:$true] %s35
      %41 = dma.hbm_to_vmem [thread:$0]  %s4, 4096, %s36, [#allocation3], 128, 128, 8
    $region21: #{tpu_custom_call.1} parent=1 // pred_fallthru
      _
    // Predicated region
    $region22: #{tpu_custom_call.1} parent=1 // pred_check
      _
    $region23: #{tpu_custom_call.1} parent=1 // pred_check_branch
      %43 = sbr.rel (0) target = $region25
    $region24: #{tpu_custom_call.1} parent=1 // pred_region
      _
    $region25: #{tpu_custom_call.1} parent=1 // pred_fallthru
      _
    // Predicated region
    $region26: #{tpu_custom_call.1} parent=1 // pred_check
      _
    $region27: #{tpu_custom_call.1} parent=1 // pred_check_branch
      %45 = sbr.rel (0) target = $region29
    $region28: #{tpu_custom_call.1} parent=1 // pred_region
      %46 = dma.done [#allocation5], 32
    $region29: #{tpu_custom_call.1} parent=1 // pred_fallthru
      _
    // Predicated region
    $region30: #{tpu_custom_call.1} parent=1 // pred_check
      _
    $region31: #{tpu_custom_call.1} parent=1 // pred_check_branch
      %48 = sbr.rel (0) target = $region33
    $region32: #{tpu_custom_call.1} parent=1 // pred_region
      %49 = dma.done [#allocation3], 4096
    $region33: #{tpu_custom_call.1} parent=1 // pred_fallthru
      _
    %50 = sfence
    %v51 = vlaneseq
    %v52 = vand.u32 %v51, 127
    %s53 = sld [smem:[#allocation2]]
    %p54 = scmp.eq.s32.totalorder %s53, 4294967295
    %s55 = scalar_select %p54, 1, %s53
    %v56 = vstv %s55
    %vm57 = vcmp.eq.s32.totalorder %v52, %v56
    %v58 = vsel %vm57, 1, 0
    %v59 = vcvt.s32.f32 %v58
    %v60 = vadd.f32 %v59, 0.0
    %s61 = sld [smem:[#allocation2 + $0x1]]
    %p62 = scmp.eq.s32.totalorder %s61, 4294967295
    %s63 = scalar_select %p62, 1, %s61
    %v64 = vstv %s63
    %vm65 = vcmp.eq.s32.totalorder %v52, %v64
    %v66 = vsel %vm65, 1, 0
    %v67 = vcvt.s32.f32 %v66
    %v68 = vadd.f32 %v60, %v67
    %s69 = sld [smem:[#allocation2 + $0x2]]
    %p70 = scmp.eq.s32.totalorder %s69, 4294967295
    %s71 = scalar_select %p70, 1, %s69
    %v72 = vstv %s71
    %vm73 = vcmp.eq.s32.totalorder %v52, %v72
    %v74 = vsel %vm73, 1, 0
    %v75 = vcvt.s32.f32 %v74
    %v76 = vadd.f32 %v68, %v75
    %s77 = sld [smem:[#allocation2 + $0x3]]
    %p78 = scmp.eq.s32.totalorder %s77, 4294967295
    %s79 = scalar_select %p78, 1, %s77
    %v80 = vstv %s79
    %vm81 = vcmp.eq.s32.totalorder %v52, %v80
    %v82 = vsel %vm81, 1, 0
    %v83 = vcvt.s32.f32 %v82
    %v84 = vadd.f32 %v76, %v83
    %s85 = sld [smem:[#allocation2 + $0x4]]
    %p86 = scmp.eq.s32.totalorder %s85, 4294967295
    %s87 = scalar_select %p86, 1, %s85
    %v88 = vstv %s87
    %vm89 = vcmp.eq.s32.totalorder %v52, %v88
    %v90 = vsel %vm89, 1, 0
    %v91 = vcvt.s32.f32 %v90
    %v92 = vadd.f32 %v84, %v91
    %s93 = sld [smem:[#allocation2 + $0x5]]
    %p94 = scmp.eq.s32.totalorder %s93, 4294967295
    %s95 = scalar_select %p94, 1, %s93
    %v96 = vstv %s95
    %vm97 = vcmp.eq.s32.totalorder %v52, %v96
    %v98 = vsel %vm97, 1, 0
    %v99 = vcvt.s32.f32 %v98
    %v100 = vadd.f32 %v92, %v99
    %s101 = sld [smem:[#allocation2 + $0x6]]
    %p102 = scmp.eq.s32.totalorder %s101, 4294967295
    %s103 = scalar_select %p102, 1, %s101
    %v104 = vstv %s103
    %vm105 = vcmp.eq.s32.totalorder %v52, %v104
    %v106 = vsel %vm105, 1, 0
    %v107 = vcvt.s32.f32 %v106
    %v108 = vadd.f32 %v100, %v107
    %s109 = sld [smem:[#allocation2 + $0x7]]
    %p110 = scmp.eq.s32.totalorder %s109, 4294967295
    %s111 = scalar_select %p110, 1, %s109
    %v112 = vstv %s111
    %vm113 = vcmp.eq.s32.totalorder %v52, %v112
    %v114 = vsel %vm113, 1, 0
    %v115 = vcvt.s32.f32 %v114
    %v116 = vadd.f32 %v108, %v115
    %v117 = vmul.f32 %v116, 0.125
    %s118 = sld [smem:[#allocation2 + $0x80]]
    %p119 = scmp.eq.s32.totalorder %s118, 4294967295
    %s120 = scalar_select %p119, 1, %s118
    %v121 = vstv %s120
    %vm122 = vcmp.eq.s32.totalorder %v52, %v121
    %v123 = vsel %vm122, 1, 0
    %v124 = vcvt.s32.f32 %v123
    %v125 = vadd.f32 %v124, 0.0
    %s126 = sld [smem:[#allocation2 + $0x81]]
    %p127 = scmp.eq.s32.totalorder %s126, 4294967295
    %s128 = scalar_select %p127, 1, %s126
    %v129 = vstv %s128
    %vm130 = vcmp.eq.s32.totalorder %v52, %v129
    %v131 = vsel %vm130, 1, 0
    %v132 = vcvt.s32.f32 %v131
    %v133 = vadd.f32 %v125, %v132
    %s134 = sld [smem:[#allocation2 + $0x82]]
    %p135 = scmp.eq.s32.totalorder %s134, 4294967295
    %s136 = scalar_select %p135, 1, %s134
    %v137 = vstv %s136
    %vm138 = vcmp.eq.s32.totalorder %v52, %v137
    %v139 = vsel %vm138, 1, 0
    %v140 = vcvt.s32.f32 %v139
    %v141 = vadd.f32 %v133, %v140
    %s142 = sld [smem:[#allocation2 + $0x83]]
    %p143 = scmp.eq.s32.totalorder %s142, 4294967295
    %s144 = scalar_select %p143, 1, %s142
    %v145 = vstv %s144
    %vm146 = vcmp.eq.s32.totalorder %v52, %v145
    %v147 = vsel %vm146, 1, 0
    %v148 = vcvt.s32.f32 %v147
    %v149 = vadd.f32 %v141, %v148
    %s150 = sld [smem:[#allocation2 + $0x84]]
    %p151 = scmp.eq.s32.totalorder %s150, 4294967295
    %s152 = scalar_select %p151, 1, %s150
    %v153 = vstv %s152
    %vm154 = vcmp.eq.s32.totalorder %v52, %v153
    %v155 = vsel %vm154, 1, 0
    %v156 = vcvt.s32.f32 %v155
    %v157 = vadd.f32 %v149, %v156
    %s158 = sld [smem:[#allocation2 + $0x85]]
    %p159 = scmp.eq.s32.totalorder %s158, 4294967295
    %s160 = scalar_select %p159, 1, %s158
    %v161 = vstv %s160
    %vm162 = vcmp.eq.s32.totalorder %v52, %v161
    %v163 = vsel %vm162, 1, 0
    %v164 = vcvt.s32.f32 %v163
    %v165 = vadd.f32 %v157, %v164
    %s166 = sld [smem:[#allocation2 + $0x86]]
    %p167 = scmp.eq.s32.totalorder %s166, 4294967295
    %s168 = scalar_select %p167, 1, %s166
    %v169 = vstv %s168
    %vm170 = vcmp.eq.s32.totalorder %v52, %v169
    %v171 = vsel %vm170, 1, 0
    %v172 = vcvt.s32.f32 %v171
    %v173 = vadd.f32 %v165, %v172
    %s174 = sld [smem:[#allocation2 + $0x87]]
    %p175 = scmp.eq.s32.totalorder %s174, 4294967295
    %s176 = scalar_select %p175, 1, %s174
    %v177 = vstv %s176
    %vm178 = vcmp.eq.s32.totalorder %v52, %v177
    %v179 = vsel %vm178, 1, 0
    %v180 = vcvt.s32.f32 %v179
    %v181 = vadd.f32 %v173, %v180
    %v182 = vmul.f32 %v181, 0.125
    %vm183 = vcmask 1040384
    %v184 = vsel %vm183, %v117, %v182
    %v185 = vld [vmem:[%s1] sm:$0xff]
    %v186 = vld [vmem:[%s1 + $0x8] sm:$0xff]
    %v187 = vld [vmem:[%s1 + $0x10] sm:$0xff]
    %v188 = vld [vmem:[%s1 + $0x18] sm:$0xff]
    %v189 = vld [vmem:[%s1 + $0x20] sm:$0xff]
    %v190 = vld [vmem:[%s1 + $0x28] sm:$0xff]
    %v191 = vld [vmem:[%s1 + $0x30] sm:$0x3]
    %vm192 = vcmask 408576
    %v194 = vsel %vm192, %v184, 0
    %vm196 = vcmask 1041408
    %v198 = vsel %vm196, %v191, 0
    %200 = vmatprep.subr.mxu0 0.0
    %201 = vmatpush1.msra.mxu0 0.0
    %202 = vmatprep.subr.mxu0 0.0
    %203 = vmatpush1.msra.mxu0 0.0
    %204 = vmatprep.subr.mxu0 0.0
    %205 = vmatpush1.msra.mxu0 0.0
    %206 = vmatprep.subr.mxu0 0.0
    %207 = vmatpush1.msra.mxu0 0.0
    %208 = vmatprep.subr.mxu0 0.0
    %209 = vmatpush1.msra.mxu0 0.0
    %210 = vmatprep.subr.mxu0 0.0
    %211 = vmatpush1.msra.mxu0 0.0
    %212 = vmatprep.subr.mxu0 0.0
    %213 = vmatpush1.msra.mxu0 0.0
    %214 = vmatprep.subr.mxu0 0.0
    %215 = vmatpush1.msra.mxu0 0.0
    %216 = vmatprep.subr.mxu0 0.0
    %217 = vmatpush1.msra.mxu0 0.0
    %218 = vmatprep.subr.mxu0 0.0
    %219 = vmatpush1.msra.mxu0 %v198
    %220 = vmatprep.subr.mxu0 0.0
    %221 = vmatpush1.msra.mxu0 %v190
    %222 = vmatprep.subr.mxu0 0.0
    %223 = vmatpush1.msra.mxu0 %v189
    %224 = vmatprep.subr.mxu0 0.0
    %225 = vmatpush1.msra.mxu0 %v188
    %226 = vmatprep.subr.mxu0 0.0
    %227 = vmatpush1.msra.mxu0 %v187
    %228 = vmatprep.subr.mxu0 0.0
    %229 = vmatpush1.msra.mxu0 %v186
    %230 = vmatprep.subr.mxu0 0.0
    %231 = vmatpush1.msra.mxu0 %v185
    %232 = vmatprep.subr.mxu0 0.0
    %233 = vmatpush2.msra.mxu0 0.0
    %234 = vmatprep.subr.mxu0 0.0
    %235 = vmatpush2.msra.mxu0 0.0
    %236 = vmatprep.subr.mxu0 0.0
    %237 = vmatpush2.msra.mxu0 0.0
    %238 = vmatprep.subr.mxu0 0.0
    %239 = vmatpush2.msra.mxu0 0.0
    %240 = vmatprep.subr.mxu0 0.0
    %241 = vmatpush2.msra.mxu0 0.0
    %242 = vmatprep.subr.mxu0 0.0
    %243 = vmatpush2.msra.mxu0 0.0
    %244 = vmatprep.subr.mxu0 0.0
    %245 = vmatpush2.msra.mxu0 0.0
    %246 = vmatprep.subr.mxu0 0.0
    %247 = vmatpush2.msra.mxu0 0.0
    %248 = vmatprep.subr.mxu0 0.0
    %249 = vmatpush2.msra.mxu0 0.0
    %250 = vmatprep.subr.mxu0 0.0
    %251 = vmatpush2.msra.mxu0 0.0
    %252 = vmatprep.subr.mxu0 0.0
    %253 = vmatpush2.msra.mxu0 0.0
    %254 = vmatprep.subr.mxu0 0.0
    %255 = vmatpush2.msra.mxu0 0.0
    %256 = vmatprep.subr.mxu0 0.0
    %257 = vmatpush2.msra.mxu0 0.0
    %258 = vmatprep.subr.mxu0 0.0
    %259 = vmatpush2.msra.mxu0 0.0
    %260 = vmatprep.subr.mxu0 0.0
    %261 = vmatpush2.msra.mxu0 0.0
    %262 = vmatprep.subr.mxu0 0.0
    %263 = vmatpush2.msra.mxu0 0.0
    %264 = vmatprep.mubr.f32.mxu0 0.0
    %265 = vmatmul.mubr.f32.gmra.mxu0 %v194
    %v266 = vpop.f32.mrf.mxu0
    %v267 = vadd.f32 0.0, %v266
    %v268 = vpop.f32.mrf.mxu0
    %269 = vdwg.mxu0
    %v270 = vld [vmem:[%s2] sm:$0xff]
    %v271 = vld [vmem:[%s2 + $0x8] sm:$0xff]
    %v272 = vld [vmem:[%s2 + $0x10] sm:$0xff]
    %v273 = vld [vmem:[%s2 + $0x18] sm:$0xff]
    %v274 = vld [vmem:[%s2 + $0x20] sm:$0xff]
    %v275 = vld [vmem:[%s2 + $0x28] sm:$0xff]
    %v276 = vld [vmem:[%s2 + $0x30] sm:$0xff]
    %v277 = vld [vmem:[%s2 + $0x38] sm:$0xff]
    %v278 = vld [vmem:[%s3] sm:$0x3]
    %v280 = vlaneseq
    %v281 = vshrl.u32 %v280, 7
    %v282 = vsub.s32 0, %v281
    %v283 = vrot.slane %v278, %v282
    %v284 = vlaneseq
    %v285 = vshrl.u32 %v284, 7
    %v286 = vsub.s32 1, %v285
    %v287 = vrot.slane %v278, %v286
    %vm290 = vcmask 261120
    %v292 = vsel %vm290, %v267, 0
    %294 = vmatprep.subr.mxu0 0.0
    %295 = vmatpush1.msra.mxu0 0.0
    %296 = vmatprep.subr.mxu0 0.0
    %297 = vmatpush1.msra.mxu0 0.0
    %298 = vmatprep.subr.mxu0 0.0
    %299 = vmatpush1.msra.mxu0 0.0
    %300 = vmatprep.subr.mxu0 0.0
    %301 = vmatpush1.msra.mxu0 0.0
    %302 = vmatprep.subr.mxu0 0.0
    %303 = vmatpush1.msra.mxu0 0.0
    %304 = vmatprep.subr.mxu0 0.0
    %305 = vmatpush1.msra.mxu0 0.0
    %306 = vmatprep.subr.mxu0 0.0
    %307 = vmatpush1.msra.mxu0 0.0
    %308 = vmatprep.subr.mxu0 0.0
    %309 = vmatpush1.msra.mxu0 0.0
    %310 = vmatprep.subr.mxu0 0.0
    %311 = vmatpush1.msra.mxu0 0.0
    %312 = vmatprep.subr.mxu0 0.0
    %313 = vmatpush1.msra.mxu0 0.0
    %314 = vmatprep.subr.mxu0 0.0
    %315 = vmatpush1.msra.mxu0 0.0
    %316 = vmatprep.subr.mxu0 0.0
    %317 = vmatpush1.msra.mxu0 0.0
    %318 = vmatprep.subr.mxu0 %v277
    %319 = vmatpush1.msra.mxu0 %v276
    %320 = vmatprep.subr.mxu0 %v275
    %321 = vmatpush1.msra.mxu0 %v274
    %322 = vmatprep.subr.mxu0 %v273
    %323 = vmatpush1.msra.mxu0 %v272
    %324 = vmatprep.subr.mxu0 %v271
    %325 = vmatpush1.msra.mxu0 %v270
    %326 = vmatprep.subr.mxu0 0.0
    %327 = vmatpush2.msra.mxu0 0.0
    %328 = vmatprep.subr.mxu0 0.0
    %329 = vmatpush2.msra.mxu0 0.0
    %330 = vmatprep.subr.mxu0 0.0
    %331 = vmatpush2.msra.mxu0 0.0
    %332 = vmatprep.subr.mxu0 0.0
    %333 = vmatpush2.msra.mxu0 0.0
    %334 = vmatprep.subr.mxu0 0.0
    %335 = vmatpush2.msra.mxu0 0.0
    %336 = vmatprep.subr.mxu0 0.0
    %337 = vmatpush2.msra.mxu0 0.0
    %338 = vmatprep.subr.mxu0 0.0
    %339 = vmatpush2.msra.mxu0 0.0
    %340 = vmatprep.subr.mxu0 0.0
    %341 = vmatpush2.msra.mxu0 0.0
    %342 = vmatprep.subr.mxu0 0.0
    %343 = vmatpush2.msra.mxu0 0.0
    %344 = vmatprep.subr.mxu0 0.0
    %345 = vmatpush2.msra.mxu0 0.0
    %346 = vmatprep.subr.mxu0 0.0
    %347 = vmatpush2.msra.mxu0 0.0
    %348 = vmatprep.subr.mxu0 0.0
    %349 = vmatpush2.msra.mxu0 0.0
    %350 = vmatprep.subr.mxu0 0.0
    %351 = vmatpush2.msra.mxu0 0.0
    %352 = vmatprep.subr.mxu0 0.0
    %353 = vmatpush2.msra.mxu0 0.0
    %354 = vmatprep.subr.mxu0 0.0
    %355 = vmatpush2.msra.mxu0 0.0
    %356 = vmatprep.subr.mxu0 0.0
    %357 = vmatpush2.msra.mxu0 0.0
    %358 = vmatprep.mubr.f32.mxu0 0.0
    %359 = vmatmul.mubr.f32.gmra.mxu0 %v292
    %v360 = vpop.f32.mrf.mxu0
    %v361 = vadd.f32 %v283, %v360
    %v362 = vpop.f32.mrf.mxu0
    %v363 = vadd.f32 %v287, %v362
    %364 = vdwg.mxu0
    %v365 = vmax.f32 %v361, 0.0
    %v366 = vmax.f32 %v363, 0.0
    %v367 = vld [vmem:[#allocation6] sm:$0xff]
    %v368 = vld [vmem:[#allocation6 + $0x8] sm:$0xff]
    %v369 = vld [vmem:[#allocation6 + $0x10] sm:$0xff]
    %v370 = vld [vmem:[#allocation6 + $0x18] sm:$0xff]
    %v371 = vld [vmem:[#allocation6 + $0x20] sm:$0xff]
    %v372 = vld [vmem:[#allocation6 + $0x28] sm:$0xff]
    %v373 = vld [vmem:[#allocation6 + $0x30] sm:$0xff]
    %v374 = vld [vmem:[#allocation6 + $0x38] sm:$0xff]
    %v375 = vld [vmem:[#allocation6 + $0x40] sm:$0xff]
    %v376 = vld [vmem:[#allocation6 + $0x48] sm:$0xff]
    %v377 = vld [vmem:[#allocation6 + $0x50] sm:$0xff]
    %v378 = vld [vmem:[#allocation6 + $0x58] sm:$0xff]
    %v379 = vld [vmem:[#allocation6 + $0x60] sm:$0xff]
    %v380 = vld [vmem:[#allocation6 + $0x68] sm:$0xff]
    %v381 = vld [vmem:[#allocation6 + $0x70] sm:$0xff]
    %v382 = vld [vmem:[#allocation6 + $0x78] sm:$0xff]
    %v383 = vld [vmem:[#allocation6 + $0x80] sm:$0xff]
    %v384 = vld [vmem:[#allocation6 + $0x88] sm:$0xff]
    %v385 = vld [vmem:[#allocation6 + $0x90] sm:$0xff]
    %v386 = vld [vmem:[#allocation6 + $0x98] sm:$0xff]
    %v387 = vld [vmem:[#allocation6 + $0xa0] sm:$0xff]
    %v388 = vld [vmem:[#allocation6 + $0xa8] sm:$0xff]
    %v389 = vld [vmem:[#allocation6 + $0xb0] sm:$0xff]
    %v390 = vld [vmem:[#allocation6 + $0xb8] sm:$0xff]
    %v391 = vld [vmem:[#allocation6 + $0xc0] sm:$0xff]
    %v392 = vld [vmem:[#allocation6 + $0xc8] sm:$0xff]
    %v393 = vld [vmem:[#allocation6 + $0xd0] sm:$0xff]
    %v394 = vld [vmem:[#allocation6 + $0xd8] sm:$0xff]
    %v395 = vld [vmem:[#allocation6 + $0xe0] sm:$0xff]
    %v396 = vld [vmem:[#allocation6 + $0xe8] sm:$0xff]
    %v397 = vld [vmem:[#allocation6 + $0xf0] sm:$0xff]
    %v398 = vld [vmem:[#allocation6 + $0xf8] sm:$0xff]
    %v399 = vld [vmem:[%s5] sm:$0x1]
    %v401 = vlaneseq
    %v402 = vshrl.u32 %v401, 7
    %v403 = vsub.s32 0, %v402
    %v404 = vrot.slane %v399, %v403
    %406 = vmatprep.subr.mxu0 0.0
    %407 = vmatpush1.msra.mxu0 %v382
    %408 = vmatprep.subr.mxu0 0.0
    %409 = vmatpush1.msra.mxu0 %v381
    %410 = vmatprep.subr.mxu0 0.0
    %411 = vmatpush1.msra.mxu0 %v380
    %412 = vmatprep.subr.mxu0 0.0
    %413 = vmatpush1.msra.mxu0 %v379
    %414 = vmatprep.subr.mxu0 0.0
    %415 = vmatpush1.msra.mxu0 %v378
    %416 = vmatprep.subr.mxu0 0.0
    %417 = vmatpush1.msra.mxu0 %v377
    %418 = vmatprep.subr.mxu0 0.0
    %419 = vmatpush1.msra.mxu0 %v376
    %420 = vmatprep.subr.mxu0 0.0
    %421 = vmatpush1.msra.mxu0 %v375
    %422 = vmatprep.subr.mxu0 0.0
    %423 = vmatpush1.msra.mxu0 %v374
    %424 = vmatprep.subr.mxu0 0.0
    %425 = vmatpush1.msra.mxu0 %v373
    %426 = vmatprep.subr.mxu0 0.0
    %427 = vmatpush1.msra.mxu0 %v372
    %428 = vmatprep.subr.mxu0 0.0
    %429 = vmatpush1.msra.mxu0 %v371
    %430 = vmatprep.subr.mxu0 0.0
    %431 = vmatpush1.msra.mxu0 %v370
    %432 = vmatprep.subr.mxu0 0.0
    %433 = vmatpush1.msra.mxu0 %v369
    %434 = vmatprep.subr.mxu0 0.0
    %435 = vmatpush1.msra.mxu0 %v368
    %436 = vmatprep.subr.mxu0 0.0
    %437 = vmatpush1.msra.mxu0 %v367
    %438 = vmatprep.subr.mxu0 0.0
    %439 = vmatpush2.msra.mxu0 %v398
    %440 = vmatprep.subr.mxu0 0.0
    %441 = vmatpush2.msra.mxu0 %v397
    %442 = vmatprep.subr.mxu0 0.0
    %443 = vmatpush2.msra.mxu0 %v396
    %444 = vmatprep.subr.mxu0 0.0
    %445 = vmatpush2.msra.mxu0 %v395
    %446 = vmatprep.subr.mxu0 0.0
    %447 = vmatpush2.msra.mxu0 %v394
    %448 = vmatprep.subr.mxu0 0.0
    %449 = vmatpush2.msra.mxu0 %v393
    %450 = vmatprep.subr.mxu0 0.0
    %451 = vmatpush2.msra.mxu0 %v392
    %452 = vmatprep.subr.mxu0 0.0
    %453 = vmatpush2.msra.mxu0 %v391
    %454 = vmatprep.subr.mxu0 0.0
    %455 = vmatpush2.msra.mxu0 %v390
    %456 = vmatprep.subr.mxu0 0.0
    %457 = vmatpush2.msra.mxu0 %v389
    %458 = vmatprep.subr.mxu0 0.0
    %459 = vmatpush2.msra.mxu0 %v388
    %460 = vmatprep.subr.mxu0 0.0
    %461 = vmatpush2.msra.mxu0 %v387
    %462 = vmatprep.subr.mxu0 0.0
    %463 = vmatpush2.msra.mxu0 %v386
    %464 = vmatprep.subr.mxu0 0.0
    %465 = vmatpush2.msra.mxu0 %v385
    %466 = vmatprep.subr.mxu0 0.0
    %467 = vmatpush2.msra.mxu0 %v384
    %468 = vmatprep.subr.mxu0 0.0
    %469 = vmatpush2.msra.mxu0 %v383
    %470 = vmatprep.mubr.f32.mxu0 %v366
    %471 = vmatmul.mubr.f32.gmra.mxu0 %v365
    %v472 = vpop.f32.mrf.mxu0
    %v473 = vadd.f32 %v404, %v472
    %v474 = vpop.f32.mrf.mxu0
    %475 = vdwg.mxu0
    %vm476 = vcmp.lt.s32.totalorder %v52, 5
    %v477 = vsel %vm476, %v473, -1e+30
    %v478 = vsel %vm196, %v477, -inf
    %479 = vmax.xlane.f32.xlu0 %v478
    %v480 = vpop.xlane.xlu0 %479
    %v481 = vsub.f32 %v477, %v480
    %v482 = vmul.f32 %v481, 1.442695
    %v483 = vpow.pop %v482
    %v484 = vsel %vm196, %v483, 0.0
    %485 = vadd.xlane.f32.xlu0 %v484
    %v486 = vpop.xlane.xlu0 %485
    %v487 = vlog2.pop %v486
    %v488 = vmul.f32 %v487, 0.6931472
    %v489 = vsub.f32 %v481, %v488
    %490 = vst [vmem:[#allocation7] sm:$0x3] %v489
    // Predicated region
    $region34: #{tpu_custom_call.1} parent=1 // pred_check
      _
    $region35: #{tpu_custom_call.1} parent=1 // pred_check_branch
      %492 = sbr.rel (0) target = $region37
    $region36: #{tpu_custom_call.1} parent=1 // pred_region
      %s494 = ssub.s32 32, 32
      %495 = vsyncadd [#allocation4], %s494
      %s497 = sshll.u32 [#allocation7], 4
      %s498 = int_to_ptr.vmem [resolvable:$true] %s497
      %500 = dma.vmem_to_hbm [thread:$0]  %s498, 32, %s6, [#allocation4]
    $region37: #{tpu_custom_call.1} parent=1 // pred_fallthru
      _
    // Predicated region
    $region38: #{tpu_custom_call.1} parent=1 // pred_check
      _
    $region39: #{tpu_custom_call.1} parent=1 // pred_check_branch
      %502 = sbr.rel (0) target = $region41
    $region40: #{tpu_custom_call.1} parent=1 // pred_region
      %503 = dma.done [#allocation4], 32
    $region41: #{tpu_custom_call.1} parent=1 // pred_fallthru
      _
    %504 = vsyncpa [#allocation3], 1
    %505 = vsyncpa [#allocation4], 1
    %506 = vsyncpa [#allocation5], 1

</llo_original>
